<compile_context>
chip_gen: v5e
topology: v5e:2x2
jax: 0.10.0
libtpu: 0.0.40
codegen_flags: <defaults>
</compile_context>

<pallas_src>
import jax
import jax.numpy as jnp
from jax.experimental import pallas as pl
from jax.experimental.pallas import tpu as pltpu

LANE = 128      # TPU lane width (last dim)
SUBLANE = 8     # TPU sublane width (second-to-last dim, f32)


def _round_up(x, m):
    return ((x + m - 1) // m) * m


def _cdiv(a, b):
    return (a + b - 1) // b


def _vmem_capacity_bytes():
    """Physical VMEM per TensorCore; falls back to 128 MiB if unqueryable."""
    try:
        info = pltpu.get_tpu_info()
        cap = getattr(info, "vmem_capacity_bytes", None)
        if cap:
            return int(cap)
    except Exception:
        pass
    return 128 << 20


def mlp_kernel(x_ref, w1_ref, b1_ref, w2_ref, b2_ref, o_ref, acc_ref):
    """One (batch-tile, hidden-tile) grid step of relu(x@w1+b1) @ w2 + b2."""
    h_idx = pl.program_id(1)

    @pl.when(h_idx == 0)
    def _init():
        acc_ref[...] = jnp.zeros_like(acc_ref)

    # Cast the streaming operand to bf16 on-chip (VPU, hidden under the MXU).
    x_bf = x_ref[...].astype(jnp.bfloat16)

    # Hidden chunk: (TB, D_in) @ (D_in, TH) -> f32, bias + ReLU on f32.
    h = jnp.dot(x_bf, w1_ref[...], preferred_element_type=jnp.float32)
    h = jnp.maximum(h + b1_ref[...], 0.0)

    # Output contribution of this hidden chunk, accumulated in f32 VMEM.
    acc_ref[...] += jnp.dot(h.astype(jnp.bfloat16), w2_ref[...],
                            preferred_element_type=jnp.float32)

    @pl.when(h_idx == pl.num_programs(1) - 1)
    def _finalize():
        o_ref[...] = (acc_ref[...] + b2_ref[...]).astype(o_ref.dtype)


def mlp_forward(x, w1, b1, w2, b2, *, block_b=None):
    """Fused MLP forward.  x: (B, D_in); w1: (D_in, H); w2: (H, out_dim)."""
    B, D_in = x.shape
    H = w1.shape[1]
    out_dim = w2.shape[1]
    assert w1.shape[0] == D_in and w2.shape[0] == H

    # ---- generation-aware VMEM budget --------------------------------------
    vmem_cap = _vmem_capacity_bytes()
    vmem_limit = max(32 << 20, (vmem_cap * 3) // 4)   # 48 MiB v7x, 96 MiB v5e/v6e
    budget = int(vmem_limit * 0.8)                    # headroom for internal scratch
    if block_b is None:
        block_b = 1024 if vmem_cap >= (96 << 20) else 256

    # ---- hidden tile: keep double-buffered weight blocks within ~half budget
    O_p = _round_up(out_dim, LANE)
    th_cap = (budget // 2) // (4 * (D_in + O_p))      # 2 bufs * 2B/elem * TH * (D_in+O_p)
    th_cap = max(LANE, (th_cap // LANE) * LANE)
    TH = min(_round_up(H, LANE), th_cap)
    H_p = _round_up(H, TH)                            # TH divides H_p exactly
    num_h = H_p // TH

    # ---- batch tile from remaining budget ----------------------------------
    x_bytes = jnp.dtype(x.dtype).itemsize
    per_row = (2 * D_in * x_bytes        # x tile, double-buffered
               + 2 * O_p * x_bytes       # out tile, double-buffered
               + TH * (4 + 2)            # h in f32 + bf16 copy for 2nd matmul
               + O_p * 4                 # 2nd-matmul f32 result
               + O_p * 4)                # f32 accumulator scratch
    fixed = 2 * (D_in * TH + TH * O_p) * 2 + 2 * (TH + O_p) * 4
    tb_cap = max(SUBLANE, (budget - fixed) // per_row)

    TB = min(block_b, tb_cap, _round_up(B, SUBLANE))
    # >= 2 grid steps on the parallel batch axis whenever possible (v7x megacore).
    TB = min(TB, max(SUBLANE, _round_up(_cdiv(B, 2), SUBLANE)))
    TB = max(SUBLANE, (TB // SUBLANE) * SUBLANE)
    num_b = _cdiv(B, TB)

    # ---- pad ONLY the weights' N dims (zero padding keeps the math exact) ---
    w1_p = jnp.pad(w1, ((0, 0), (0, H_p - H))).astype(jnp.bfloat16)
    b1_p = jnp.pad(b1.reshape(1, -1), ((0, 0), (0, H_p - H))).astype(jnp.float32)
    w2_p = jnp.pad(w2, ((0, H_p - H), (0, O_p - out_dim))).astype(jnp.bfloat16)
    b2_p = jnp.pad(b2.reshape(1, -1), ((0, 0), (0, O_p - out_dim))).astype(jnp.float32)

    def build(single_buffer_weights):
        # Weights/biases have constant (or h-only) index maps; when the whole
        # hidden dim fits one tile they are fully resident -> a second pipeline
        # buffer is pure VMEM waste.
        w_kw = {"pipeline_mode": pl.Buffered(1)} if single_buffer_weights else {}
        return pl.pallas_call(
            mlp_kernel,
            out_shape=jax.ShapeDtypeStruct((B, O_p), x.dtype),
            grid=(num_b, num_h),
            in_specs=[
                pl.BlockSpec((TB, D_in), lambda i, h: (i, 0)),
                pl.BlockSpec((D_in, TH), lambda i, h: (0, h), **w_kw),
                pl.BlockSpec((1, TH), lambda i, h: (0, h), **w_kw),
                pl.BlockSpec((TH, O_p), lambda i, h: (h, 0), **w_kw),
                pl.BlockSpec((1, O_p), lambda i, h: (0, 0), **w_kw),
            ],
            out_specs=pl.BlockSpec((TB, O_p), lambda i, h: (i, 0)),
            scratch_shapes=[pltpu.VMEM((TB, O_p), jnp.float32)],
            compiler_params=pltpu.CompilerParams(
                dimension_semantics=("parallel", "arbitrary"),
                vmem_limit_bytes=int(vmem_limit),
            ),
        )

    if num_h == 1:
        try:
            out_p = build(True)(x, w1_p, b1_p, w2_p, b2_p)
        except Exception:
            # pipeline_mode/Buffered(1) unsupported on this JAX -> default buffering.
            out_p = build(False)(x, w1_p, b1_p, w2_p, b2_p)
    else:
        out_p = build(False)(x, w1_p, b1_p, w2_p, b2_p)

    # Slice away the output-column padding (batch was never padded).
    return out_p[:, :out_dim]


def init_params(key, input_dim, hidden_dim, out_dim=2, dtype=jnp.float32):
    # PyTorch nn.Linear default init: U(-1/sqrt(fan_in), 1/sqrt(fan_in)).
    k1, k2, k3, k4 = jax.random.split(key, 4)
    bound1 = 1.0 / (input_dim ** 0.5)
    bound2 = 1.0 / (hidden_dim ** 0.5)
    w1 = jax.random.uniform(k1, (input_dim, hidden_dim), dtype, -bound1, bound1)
    b1 = jax.random.uniform(k2, (hidden_dim,), dtype, -bound1, bound1)
    w2 = jax.random.uniform(k3, (hidden_dim, out_dim), dtype, -bound2, bound2)
    b2 = jax.random.uniform(k4, (out_dim,), dtype, -bound2, bound2)
    return w1, b1, w2, b2


if __name__ == "__main__":
    key = jax.random.PRNGKey(0)
    k_x, k_p = jax.random.split(key)

    batch, input_dim, hidden_dim = 8, 16, 32
    x = jax.random.normal(k_x, (batch, input_dim), dtype=jnp.float32)
    w1, b1, w2, b2 = init_params(k_p, input_dim, hidden_dim)

    out = jax.block_until_ready(mlp_forward(x, w1, b1, w2, b2))
    assert out.shape == (batch, 2)

    # Reference 1: pure-f32 Linear -> ReLU -> Linear (loose tol: kernel uses
    # bf16 MXU operands with f32 accumulation).
    ref_f32 = jnp.maximum(x @ w1 + b1, 0.0) @ w2 + b2
    assert jnp.allclose(out, ref_f32, atol=5e-2, rtol=5e-2), "f32 reference mismatch"

    # Reference 2: emulate the kernel's bf16-operand / f32-accumulate precision.
    bf = jnp.bfloat16
    f32 = jnp.float32
    h_ref = jnp.maximum(
        jnp.dot(x.astype(bf).astype(f32), w1.astype(bf).astype(f32)) + b1, 0.0)
    ref_mixed = jnp.dot(h_ref.astype(bf).astype(f32), w2.astype(bf).astype(f32)) + b2
    assert jnp.allclose(out, ref_mixed, atol=1e-4, rtol=1e-4), "mixed-precision reference mismatch"

    print("KERNEL_OK")
</pallas_src>

<mosaic_0001>
module attributes {stable_mosaic.version = 11 : i64} {
  func.func @mlp_kernel(%arg0: i32, %arg1: i32, %arg2: memref<8x16xf32, #tpu.memory_space<vmem>>, %arg3: memref<16x128xbf16, #tpu.memory_space<vmem>>, %arg4: memref<1x128xf32, #tpu.memory_space<vmem>>, %arg5: memref<128x128xbf16, #tpu.memory_space<vmem>>, %arg6: memref<1x128xf32, #tpu.memory_space<vmem>>, %arg7: memref<8x128xf32, #tpu.memory_space<vmem>>, %arg8: memref<8x128xf32, #tpu.memory_space<vmem>>) attributes {dimension_semantics = [#tpu.dimension_semantics<parallel>, #tpu.dimension_semantics<arbitrary>], iteration_bounds = array<i64: 1, 1>, scalar_prefetch = 0 : i64, scratch_operands = 1 : i64, tpu.core_type = #tpu.core_type<tc>, window_params = [{transform_indices = @transform_0, window_bounds = array<i64: 8, 16>}, {pipeline_mode = #tpu.pipeline_mode<synchronous>, transform_indices = @transform_1, window_bounds = array<i64: 16, 128>}, {pipeline_mode = #tpu.pipeline_mode<synchronous>, transform_indices = @transform_2, window_bounds = array<i64: 1, 128>}, {pipeline_mode = #tpu.pipeline_mode<synchronous>, transform_indices = @transform_3, window_bounds = array<i64: 128, 128>}, {pipeline_mode = #tpu.pipeline_mode<synchronous>, transform_indices = @transform_4, window_bounds = array<i64: 1, 128>}, {transform_indices = @transform_5, window_bounds = array<i64: 8, 128>}]} {
    %c0_i32 = arith.constant 0 : i32
    %0 = arith.cmpi eq, %arg1, %c0_i32 : i32
    %1 = arith.extui %0 : i1 to i32
    %c0_i32_0 = arith.constant 0 : i32
    %2 = arith.cmpi ne, %1, %c0_i32_0 : i32
    scf.if %2 {
      %cst_16 = arith.constant 0.000000e+00 : f32
      %21 = vector.broadcast %cst_16 : f32 to vector<8x128xf32>
      %c0_17 = arith.constant 0 : index
      %c0_18 = arith.constant 0 : index
      %22 = vector.load %arg8[%c0_17, %c0_18] : memref<8x128xf32, #tpu.memory_space<vmem>>, vector<8x128xf32>
      tpu.vector_store %arg8[%c0_17, %c0_18], %21 {strides = array<i32>} : memref<8x128xf32, #tpu.memory_space<vmem>>, vector<8x128xf32>,
    } else {
    }
    %c0 = arith.constant 0 : index
    %c0_1 = arith.constant 0 : index
    %3 = vector.load %arg2[%c0, %c0_1] : memref<8x16xf32, #tpu.memory_space<vmem>>, vector<8x16xf32>
    %4 = arith.truncf %3 : vector<8x16xf32> to vector<8x16xbf16>
    %c0_2 = arith.constant 0 : index
    %c0_3 = arith.constant 0 : index
    %5 = vector.load %arg3[%c0_2, %c0_3] : memref<16x128xbf16, #tpu.memory_space<vmem>>, vector<16x128xbf16>
    %cst = arith.constant dense<0.000000e+00> : vector<8x128xf32>
    %6 = tpu.matmul %4, %5, %cst {dimension_numbers = #tpu.dot_dimension_numbers<[1], [0], [0], [1], [0, 0, 1, 1], [], []>} : vector<8x16xbf16>, vector<16x128xbf16>, vector<8x128xf32> -> vector<8x128xf32>
    %c0_4 = arith.constant 0 : index
    %c0_5 = arith.constant 0 : index
    %7 = vector.load %arg4[%c0_4, %c0_5] : memref<1x128xf32, #tpu.memory_space<vmem>>, vector<1x128xf32>
    %8 = vector.broadcast %7 : vector<1x128xf32> to vector<8x128xf32>
    %9 = arith.addf %6, %8 : vector<8x128xf32>
    %cst_6 = arith.constant 0.000000e+00 : f32
    %10 = vector.broadcast %cst_6 : f32 to vector<8x128xf32>
    %11 = arith.maximumf %9, %10 : vector<8x128xf32>
    %c0_7 = arith.constant 0 : index
    %c0_8 = arith.constant 0 : index
    %12 = vector.load %arg8[%c0_7, %c0_8] : memref<8x128xf32, #tpu.memory_space<vmem>>, vector<8x128xf32>
    %13 = arith.truncf %11 : vector<8x128xf32> to vector<8x128xbf16>
    %c0_9 = arith.constant 0 : index
    %c0_10 = arith.constant 0 : index
    %14 = vector.load %arg5[%c0_9, %c0_10] : memref<128x128xbf16, #tpu.memory_space<vmem>>, vector<128x128xbf16>
    %cst_11 = arith.constant dense<0.000000e+00> : vector<8x128xf32>
    %15 = tpu.matmul %13, %14, %cst_11 {dimension_numbers = #tpu.dot_dimension_numbers<[1], [0], [0], [1], [0, 0, 1, 1], [], []>} : vector<8x128xbf16>, vector<128x128xbf16>, vector<8x128xf32> -> vector<8x128xf32>
    %16 = arith.addf %12, %15 : vector<8x128xf32>
    %c0_12 = arith.constant 0 : index
    %c0_13 = arith.constant 0 : index
    %17 = vector.load %arg8[%c0_12, %c0_13] : memref<8x128xf32, #tpu.memory_space<vmem>>, vector<8x128xf32>
    tpu.vector_store %arg8[%c0_12, %c0_13], %16 {strides = array<i32>} : memref<8x128xf32, #tpu.memory_space<vmem>>, vector<8x128xf32>,
    %c0_i32_14 = arith.constant 0 : i32
    %18 = arith.cmpi eq, %arg1, %c0_i32_14 : i32
    %19 = arith.extui %18 : i1 to i32
    %c0_i32_15 = arith.constant 0 : i32
    %20 = arith.cmpi ne, %19, %c0_i32_15 : i32
    scf.if %20 {
      %c0_16 = arith.constant 0 : index
      %c0_17 = arith.constant 0 : index
      %21 = vector.load %arg8[%c0_16, %c0_17] : memref<8x128xf32, #tpu.memory_space<vmem>>, vector<8x128xf32>
      %c0_18 = arith.constant 0 : index
      %c0_19 = arith.constant 0 : index
      %22 = vector.load %arg6[%c0_18, %c0_19] : memref<1x128xf32, #tpu.memory_space<vmem>>, vector<1x128xf32>
      %23 = vector.broadcast %22 : vector<1x128xf32> to vector<8x128xf32>
      %24 = arith.addf %21, %23 : vector<8x128xf32>
      %c0_20 = arith.constant 0 : index
      %c0_21 = arith.constant 0 : index
      %25 = vector.load %arg7[%c0_20, %c0_21] : memref<8x128xf32, #tpu.memory_space<vmem>>, vector<8x128xf32>
      tpu.vector_store %arg7[%c0_20, %c0_21], %24 {strides = array<i32>} : memref<8x128xf32, #tpu.memory_space<vmem>>, vector<8x128xf32>,
    } else {
    }
    return
  }
  func.func @transform_0(%arg0: i32, %arg1: i32) -> (i32, i32) {
    %c0_i32 = arith.constant 0 : i32
    %c0_i32_0 = arith.constant 0 : i32
    return %arg0, %c0_i32 : i32, i32
  }
  func.func @transform_1(%arg0: i32, %arg1: i32) -> (i32, i32) {
    %c0_i32 = arith.constant 0 : i32
    %c0_i32_0 = arith.constant 0 : i32
    return %c0_i32, %arg1 : i32, i32
  }
  func.func @transform_2(%arg0: i32, %arg1: i32) -> (i32, i32) {
    %c0_i32 = arith.constant 0 : i32
    %c0_i32_0 = arith.constant 0 : i32
    return %c0_i32, %arg1 : i32, i32
  }
  func.func @transform_3(%arg0: i32, %arg1: i32) -> (i32, i32) {
    %c0_i32 = arith.constant 0 : i32
    %c0_i32_0 = arith.constant 0 : i32
    return %arg1, %c0_i32 : i32, i32
  }
  func.func @transform_4(%arg0: i32, %arg1: i32) -> (i32, i32) {
    %c0_i32 = arith.constant 0 : i32
    %c0_i32_0 = arith.constant 0 : i32
    %c0_i32_1 = arith.constant 0 : i32
    return %c0_i32, %c0_i32_0 : i32, i32
  }
  func.func @transform_5(%arg0: i32, %arg1: i32) -> (i32, i32) {
    %c0_i32 = arith.constant 0 : i32
    %c0_i32_0 = arith.constant 0 : i32
    return %arg0, %c0_i32 : i32, i32
  }
}

module attributes {stable_mosaic.version = 11 : i64} {
  func.func @mlp_kernel(%arg0: i32, %arg1: i32, %arg2: memref<8x16xf32, #tpu.memory_space<vmem>>, %arg3: memref<16x128xbf16, #tpu.memory_space<vmem>>, %arg4: memref<1x128xf32, #tpu.memory_space<vmem>>, %arg5: memref<128x128xbf16, #tpu.memory_space<vmem>>, %arg6: memref<1x128xf32, #tpu.memory_space<vmem>>, %arg7: memref<8x128xf32, #tpu.memory_space<vmem>>, %arg8: memref<8x128xf32, #tpu.memory_space<vmem>>) attributes {dimension_semantics = [#tpu.dimension_semantics<parallel>, #tpu.dimension_semantics<arbitrary>], iteration_bounds = array<i64: 1, 1>, scalar_prefetch = 0 : i64, scratch_operands = 1 : i64, tpu.core_type = #tpu.core_type<tc>, window_params = [{transform_indices = @transform_0, window_bounds = array<i64: 8, 16>}, {transform_indices = @transform_1, window_bounds = array<i64: 16, 128>}, {transform_indices = @transform_2, window_bounds = array<i64: 1, 128>}, {transform_indices = @transform_3, window_bounds = array<i64: 128, 128>}, {pipeline_mode = #tpu.pipeline_mode<synchronous>, transform_indices = @transform_4, window_bounds = array<i64: 1, 128>}, {transform_indices = @transform_5, window_bounds = array<i64: 8, 128>}]} {
    %c0_i32 = arith.constant 0 : i32
    %0 = arith.cmpi eq, %arg1, %c0_i32 : i32
    %1 = arith.extui %0 : i1 to i32
    %c0_i32_0 = arith.constant 0 : i32
    %2 = arith.cmpi ne, %1, %c0_i32_0 : i32
    scf.if %2 {
      %cst_16 = arith.constant 0.000000e+00 : f32
      %21 = vector.broadcast %cst_16 : f32 to vector<8x128xf32>
      %c0_17 = arith.constant 0 : index
      %c0_18 = arith.constant 0 : index
      %22 = vector.load %arg8[%c0_17, %c0_18] : memref<8x128xf32, #tpu.memory_space<vmem>>, vector<8x128xf32>
      tpu.vector_store %arg8[%c0_17, %c0_18], %21 {strides = array<i32>} : memref<8x128xf32, #tpu.memory_space<vmem>>, vector<8x128xf32>,
    } else {
    }
    %c0 = arith.constant 0 : index
    %c0_1 = arith.constant 0 : index
    %3 = vector.load %arg2[%c0, %c0_1] : memref<8x16xf32, #tpu.memory_space<vmem>>, vector<8x16xf32>
    %4 = arith.truncf %3 : vector<8x16xf32> to vector<8x16xbf16>
    %c0_2 = arith.constant 0 : index
    %c0_3 = arith.constant 0 : index
    %5 = vector.load %arg3[%c0_2, %c0_3] : memref<16x128xbf16, #tpu.memory_space<vmem>>, vector<16x128xbf16>
    %cst = arith.constant dense<0.000000e+00> : vector<8x128xf32>
    %6 = tpu.matmul %4, %5, %cst {dimension_numbers = #tpu.dot_dimension_numbers<[1], [0], [0], [1], [0, 0, 1, 1], [], []>} : vector<8x16xbf16>, vector<16x128xbf16>, vector<8x128xf32> -> vector<8x128xf32>
    %c0_4 = arith.constant 0 : index
    %c0_5 = arith.constant 0 : index
    %7 = vector.load %arg4[%c0_4, %c0_5] : memref<1x128xf32, #tpu.memory_space<vmem>>, vector<1x128xf32>
    %8 = vector.broadcast %7 : vector<1x128xf32> to vector<8x128xf32>
    %9 = arith.addf %6, %8 : vector<8x128xf32>
    %cst_6 = arith.constant 0.000000e+00 : f32
    %10 = vector.broadcast %cst_6 : f32 to vector<8x128xf32>
    %11 = arith.maximumf %9, %10 : vector<8x128xf32>
    %c0_7 = arith.constant 0 : index
    %c0_8 = arith.constant 0 : index
    %12 = vector.load %arg8[%c0_7, %c0_8] : memref<8x128xf32, #tpu.memory_space<vmem>>, vector<8x128xf32>
    %13 = arith.truncf %11 : vector<8x128xf32> to vector<8x128xbf16>
    %c0_9 = arith.constant 0 : index
    %c0_10 = arith.constant 0 : index
    %14 = vector.load %arg5[%c0_9, %c0_10] : memref<128x128xbf16, #tpu.memory_space<vmem>>, vector<128x128xbf16>
    %cst_11 = arith.constant dense<0.000000e+00> : vector<8x128xf32>
    %15 = tpu.matmul %13, %14, %cst_11 {dimension_numbers = #tpu.dot_dimension_numbers<[1], [0], [0], [1], [0, 0, 1, 1], [], []>} : vector<8x128xbf16>, vector<128x128xbf16>, vector<8x128xf32> -> vector<8x128xf32>
    %16 = arith.addf %12, %15 : vector<8x128xf32>
    %c0_12 = arith.constant 0 : index
    %c0_13 = arith.constant 0 : index
    %17 = vector.load %arg8[%c0_12, %c0_13] : memref<8x128xf32, #tpu.memory_space<vmem>>, vector<8x128xf32>
    tpu.vector_store %arg8[%c0_12, %c0_13], %16 {strides = array<i32>} : memref<8x128xf32, #tpu.memory_space<vmem>>, vector<8x128xf32>,
    %c0_i32_14 = arith.constant 0 : i32
    %18 = arith.cmpi eq, %arg1, %c0_i32_14 : i32
    %19 = arith.extui %18 : i1 to i32
    %c0_i32_15 = arith.constant 0 : i32
    %20 = arith.cmpi ne, %19, %c0_i32_15 : i32
    scf.if %20 {
      %c0_16 = arith.constant 0 : index
      %c0_17 = arith.constant 0 : index
      %21 = vector.load %arg8[%c0_16, %c0_17] : memref<8x128xf32, #tpu.memory_space<vmem>>, vector<8x128xf32>
      %c0_18 = arith.constant 0 : index
      %c0_19 = arith.constant 0 : index
      %22 = vector.load %arg6[%c0_18, %c0_19] : memref<1x128xf32, #tpu.memory_space<vmem>>, vector<1x128xf32>
      %23 = vector.broadcast %22 : vector<1x128xf32> to vector<8x128xf32>
      %24 = arith.addf %21, %23 : vector<8x128xf32>
      %c0_20 = arith.constant 0 : index
      %c0_21 = arith.constant 0 : index
      %25 = vector.load %arg7[%c0_20, %c0_21] : memref<8x128xf32, #tpu.memory_space<vmem>>, vector<8x128xf32>
      tpu.vector_store %arg7[%c0_20, %c0_21], %24 {strides = array<i32>} : memref<8x128xf32, #tpu.memory_space<vmem>>, vector<8x128xf32>,
    } else {
    }
    return
  }
  func.func @transform_0(%arg0: i32, %arg1: i32) -> (i32, i32) {
    %c0_i32 = arith.constant 0 : i32
    %c0_i32_0 = arith.constant 0 : i32
    return %arg0, %c0_i32 : i32, i32
  }
  func.func @transform_1(%arg0: i32, %arg1: i32) -> (i32, i32) {
    %c0_i32 = arith.constant 0 : i32
    %c0_i32_0 = arith.constant 0 : i32
    return %c0_i32, %arg1 : i32, i32
  }
  func.func @transform_2(%arg0: i32, %arg1: i32) -> (i32, i32) {
    %c0_i32 = arith.constant 0 : i32
    %c0_i32_0 = arith.constant 0 : i32
    return %c0_i32, %arg1 : i32, i32
  }
  func.func @transform_3(%arg0: i32, %arg1: i32) -> (i32, i32) {
    %c0_i32 = arith.constant 0 : i32
    %c0_i32_0 = arith.constant 0 : i32
    return %arg1, %c0_i32 : i32, i32
  }
  func.func @transform_4(%arg0: i32, %arg1: i32) -> (i32, i32) {
    %c0_i32 = arith.constant 0 : i32
    %c0_i32_0 = arith.constant 0 : i32
    %c0_i32_1 = arith.constant 0 : i32
    return %c0_i32, %c0_i32_0 : i32, i32
  }
  func.func @transform_5(%arg0: i32, %arg1: i32) -> (i32, i32) {
    %c0_i32 = arith.constant 0 : i32
    %c0_i32_0 = arith.constant 0 : i32
    return %arg0, %c0_i32 : i32, i32
  }
}

</mosaic_0001>

<llo_original>
// kernel: tpu_custom_call.1
$region0: #{tpu_custom_call.1}
  #allocation0 [shape = 'u32[]', space=smem, size = 0x4, offset = 0x4, fixed_abs, tag = 'smem constant byte address 0x4 - core index']
  #allocation1 [shape = 'u32[72,128]{1,0:T(1,128)}', space=vmem, size = 0x9000, scoped, tag = 'internal scratch']
  #allocation2 [shape = 'f32[8,128]{1,0:T(8,128)}', space=vmem, size = 0x1000, scoped, tag = 'scratch operand']
  %s0 = inlined_call_operand.hbm [shape: f32[8,16], index: 0, kind: input, shape index: {}]
  %s1 = inlined_call_operand.hbm [shape: bf16[16,128], index: 1, kind: input, shape index: {}]
  %s2 = inlined_call_operand.vmem [shape: f32[1,128], index: 2, kind: input, shape index: {}]
  %s3 = inlined_call_operand.hbm [shape: bf16[128,128], index: 3, kind: input, shape index: {}]
  %s4 = inlined_call_operand.vmem [shape: f32[1,128], index: 4, kind: input, shape index: {}]
  %s5 = inlined_call_operand.hbm [shape: f32[8,128], index: 5, kind: output, shape index: {}]
  %s6 = sld [smem:[#allocation0]]
  $region50: #{tpu_custom_call.1} parent=0
    _
  %s8 = ssub.s32 1, %s6
  %s9 = scalar_select 0, %s8, %s6
  $region1: #{tpu_custom_call.1} parent=0
    #allocation3 [shape = 'u8[4096]{0}', space=vmem, size = 0x1000, scoped, tag = 'input window, operand 0, single buffered']
    #allocation4 [shape = 's32[1]{0}', space=sflag, size = 0x4, scoped, tag = 'scoped memory for tpu_custom_call.1']
    #allocation5 [shape = 's32[1]{0}', space=sflag, size = 0x4, scoped, tag = 'scoped memory for tpu_custom_call.1']
    #allocation6 [shape = 'u8[4096]{0}', space=vmem, size = 0x1000, scoped, tag = 'input window, operand 1, single buffered']
    #allocation7 [shape = 's32[1]{0}', space=sflag, size = 0x4, scoped, tag = 'scoped memory for tpu_custom_call.1']
    #allocation8 [shape = 'u8[32768]{0}', space=vmem, size = 0x8000, scoped, tag = 'input window, operand 3, single buffered']
    #allocation9 [shape = 'u8[4096]{0}', space=vmem, size = 0x1000, scoped, tag = 'output window, operand 0, single buffered']
    %10 = vsyncpa [#allocation4], 0
    %11 = vsyncpa [#allocation7], 0
    %12 = vsyncpa [#allocation5], 0
    // Predicated region
    $region2: #{tpu_custom_call.1} parent=1 // pred_check
      _
    $region3: #{tpu_custom_call.1} parent=1 // pred_check_branch
      %14 = sbr.rel (0) target = $region5
    $region4: #{tpu_custom_call.1} parent=1 // pred_region
      %16 = vsyncadd [#allocation4], 0
      %s18 = sshll.u32 %s0, 4
      %s19 = int_to_ptr.hbm [resolvable:$true] %s18
      %s20 = sshll.u32 [#allocation3], 4
      %s21 = int_to_ptr.vmem [resolvable:$true] %s20
      %23 = dma.hbm_to_vmem [thread:$0]  %s19, 128, %s21, [#allocation4]
    $region5: #{tpu_custom_call.1} parent=1 // pred_fallthru
      _
    // Predicated region
    $region6: #{tpu_custom_call.1} parent=1 // pred_check
      _
    $region7: #{tpu_custom_call.1} parent=1 // pred_check_branch
      %25 = sbr.rel (0) target = $region9
    $region8: #{tpu_custom_call.1} parent=1 // pred_region
      %27 = vsyncadd [#allocation7], 0
      %s28 = sshll.u32 %s1, 4
      %s29 = int_to_ptr.hbm [resolvable:$true] %s28
      %s30 = sshll.u32 [#allocation6], 4
      %s31 = int_to_ptr.vmem [resolvable:$true] %s30
      %36 = dma.hbm_to_vmem [thread:$0]  %s29, 128, %s31, [#allocation7], 64, 64, 4
    $region9: #{tpu_custom_call.1} parent=1 // pred_fallthru
      _
    // Predicated region
    $region10: #{tpu_custom_call.1} parent=1 // pred_check
      _
    $region11: #{tpu_custom_call.1} parent=1 // pred_check_branch
      %38 = sbr.rel (0) target = $region13
    $region12: #{tpu_custom_call.1} parent=1 // pred_region
      _
    $region13: #{tpu_custom_call.1} parent=1 // pred_fallthru
      _
    // Predicated region
    $region14: #{tpu_custom_call.1} parent=1 // pred_check
      _
    $region15: #{tpu_custom_call.1} parent=1 // pred_check_branch
      %40 = sbr.rel (0) target = $region17
    $region16: #{tpu_custom_call.1} parent=1 // pred_region
      %42 = vsyncadd [#allocation7], 0
      %s43 = sshll.u32 %s3, 4
      %s44 = int_to_ptr.hbm [resolvable:$true] %s43
      %s45 = sshll.u32 [#allocation8], 4
      %s46 = int_to_ptr.vmem [resolvable:$true] %s45
      %51 = dma.hbm_to_vmem [thread:$0]  %s44, 1024, %s46, [#allocation7], 64, 64, 4
    $region17: #{tpu_custom_call.1} parent=1 // pred_fallthru
      _
    // Predicated region
    $region18: #{tpu_custom_call.1} parent=1 // pred_check
      _
    $region19: #{tpu_custom_call.1} parent=1 // pred_check_branch
      %53 = sbr.rel (0) target = $region21
    $region20: #{tpu_custom_call.1} parent=1 // pred_region
      _
    $region21: #{tpu_custom_call.1} parent=1 // pred_fallthru
      _
    // Predicated region
    $region22: #{tpu_custom_call.1} parent=1 // pred_check
      _
    $region23: #{tpu_custom_call.1} parent=1 // pred_check_branch
      %55 = sbr.rel (0) target = $region25
    $region24: #{tpu_custom_call.1} parent=1 // pred_region
      %57 = dma.done [#allocation4], 128
    $region25: #{tpu_custom_call.1} parent=1 // pred_fallthru
      _
    // Predicated region
    $region26: #{tpu_custom_call.1} parent=1 // pred_check
      _
    $region27: #{tpu_custom_call.1} parent=1 // pred_check_branch
      %59 = sbr.rel (0) target = $region29
    $region28: #{tpu_custom_call.1} parent=1 // pred_region
      %61 = dma.done [#allocation7], 128
    $region29: #{tpu_custom_call.1} parent=1 // pred_fallthru
      _
    // Predicated region
    $region30: #{tpu_custom_call.1} parent=1 // pred_check
      _
    $region31: #{tpu_custom_call.1} parent=1 // pred_check_branch
      %63 = sbr.rel (0) target = $region33
    $region32: #{tpu_custom_call.1} parent=1 // pred_region
      %65 = dma.done [#allocation7], 1024
    $region33: #{tpu_custom_call.1} parent=1 // pred_fallthru
      _
    %p67 = scmp.eq.s32.totalorder 0, 0
    // Predicated region
    $region34: #{tpu_custom_call.1} parent=1 // pred_check
      %p68 = pneg %p67
    $region35: #{tpu_custom_call.1} parent=1 // pred_check_branch
      %70 = sbr.rel (%p68) target = $region37
    $region36: #{tpu_custom_call.1} parent=1 // pred_region
      %71 = vst [vmem:[#allocation2] sm:$0xff] 0.0
    $region37: #{tpu_custom_call.1} parent=1 // pred_fallthru
      _
    %v72 = vld [vmem:[#allocation3] sm:$0xff]
    %v73 = vpack.c.bf16 %v72, %v72
    %v74 = vld [vmem:[#allocation6] sm:$0xf]
    %v75 = vld [vmem:[#allocation6 + $0x4] sm:$0xf]
    %v76 = vld [vmem:[%s2] sm:$0x1]
    %v78 = vperm.slane %v76, 0
    %v82 = vunpack.c.l.b16 %v74
    %v83 = vunpack.c.l.b16 %v75
    %v84 = vpack.c.b16 %v83, %v82
    %vm86 = vcmask 130048
    %v88 = vsel %vm86, %v73, 0
    %90 = vmatpush.bf16.msra.mxu0 0
    %91 = vmatpush.bf16.msra.mxu0 0
    %92 = vmatpush.bf16.msra.mxu0 0
    %93 = vmatpush.bf16.msra.mxu0 0
    %94 = vmatpush.bf16.msra.mxu0 0
    %95 = vmatpush.bf16.msra.mxu0 0
    %96 = vmatpush.bf16.msra.mxu0 0
    %97 = vmatpush.bf16.msra.mxu0 %v84
    %98 = vmatmul.bf16.gmra.mxu0 %v88
    %v99 = vpop.f32.mrf.mxu0
    %v100 = vadd.f32 %v78, %v99
    %v101 = vpop.f32.mrf.mxu0
    %102 = vdwg.mxu0
    %v103 = vmax.f32 %v100, 0.0
    %v104 = vld [vmem:[#allocation2] sm:$0xff]
    %v105 = vpack.c.bf16 %v103, %v103
    %v106 = vld [vmem:[#allocation8] sm:$0xf]
    %v107 = vld [vmem:[#allocation8 + $0x4] sm:$0xf]
    %v108 = vld [vmem:[#allocation8 + $0x8] sm:$0xf]
    %v109 = vld [vmem:[#allocation8 + $0xc] sm:$0xf]
    %v110 = vld [vmem:[#allocation8 + $0x10] sm:$0xf]
    %v111 = vld [vmem:[#allocation8 + $0x14] sm:$0xf]
    %v112 = vld [vmem:[#allocation8 + $0x18] sm:$0xf]
    %v113 = vld [vmem:[#allocation8 + $0x1c] sm:$0xf]
    %v114 = vld [vmem:[#allocation8 + $0x20] sm:$0xf]
    %v115 = vld [vmem:[#allocation8 + $0x24] sm:$0xf]
    %v116 = vld [vmem:[#allocation8 + $0x28] sm:$0xf]
    %v117 = vld [vmem:[#allocation8 + $0x2c] sm:$0xf]
    %v118 = vld [vmem:[#allocation8 + $0x30] sm:$0xf]
    %v119 = vld [vmem:[#allocation8 + $0x34] sm:$0xf]
    %v120 = vld [vmem:[#allocation8 + $0x38] sm:$0xf]
    %v121 = vld [vmem:[#allocation8 + $0x3c] sm:$0xf]
    %v138 = vunpack.c.l.b16 %v106
    %v139 = vunpack.c.l.b16 %v107
    %v140 = vunpack.c.l.b16 %v108
    %v141 = vunpack.c.l.b16 %v109
    %v142 = vunpack.c.l.b16 %v110
    %v143 = vunpack.c.l.b16 %v111
    %v144 = vunpack.c.l.b16 %v112
    %v145 = vunpack.c.l.b16 %v113
    %v146 = vunpack.c.l.b16 %v114
    %v147 = vunpack.c.l.b16 %v115
    %v148 = vunpack.c.l.b16 %v116
    %v149 = vunpack.c.l.b16 %v117
    %v150 = vunpack.c.l.b16 %v118
    %v151 = vunpack.c.l.b16 %v119
    %v152 = vunpack.c.l.b16 %v120
    %v153 = vunpack.c.l.b16 %v121
    %v154 = vpack.c.b16 %v139, %v138
    %v155 = vpack.c.b16 %v141, %v140
    %v156 = vpack.c.b16 %v143, %v142
    %v157 = vpack.c.b16 %v145, %v144
    %v158 = vpack.c.b16 %v147, %v146
    %v159 = vpack.c.b16 %v149, %v148
    %v160 = vpack.c.b16 %v151, %v150
    %v161 = vpack.c.b16 %v153, %v152
    %170 = vmatpush.bf16.msra.mxu0 %v161
    %171 = vmatpush.bf16.msra.mxu0 %v160
    %172 = vmatpush.bf16.msra.mxu0 %v159
    %173 = vmatpush.bf16.msra.mxu0 %v158
    %174 = vmatpush.bf16.msra.mxu0 %v157
    %175 = vmatpush.bf16.msra.mxu0 %v156
    %176 = vmatpush.bf16.msra.mxu0 %v155
    %177 = vmatpush.bf16.msra.mxu0 %v154
    %178 = vmatmul.bf16.gmra.mxu0 %v105
    %v179 = vpop.f32.mrf.mxu0
    %v180 = vadd.f32 0.0, %v179
    %v181 = vpop.f32.mrf.mxu0
    %182 = vdwg.mxu0
    %v183 = vadd.f32 %v104, %v180
    %184 = vst [vmem:[#allocation2] sm:$0xff] %v183
    // Predicated region
    $region38: #{tpu_custom_call.1} parent=1 // pred_check
      %p185 = pneg %p67
    $region39: #{tpu_custom_call.1} parent=1 // pred_check_branch
      %187 = sbr.rel (%p185) target = $region41
    $region40: #{tpu_custom_call.1} parent=1 // pred_region
      %v188 = vld [vmem:[#allocation2] sm:$0xff]
      %v189 = vld [vmem:[%s4] sm:$0x1]
      %v191 = vperm.slane %v189, 0
      %v193 = vadd.f32 %v188, %v191
      %194 = vst [vmem:[#allocation9] sm:$0xff] %v193
    $region41: #{tpu_custom_call.1} parent=1 // pred_fallthru
      _
    // Predicated region
    $region42: #{tpu_custom_call.1} parent=1 // pred_check
      _
    $region43: #{tpu_custom_call.1} parent=1 // pred_check_branch
      %196 = sbr.rel (0) target = $region45
    $region44: #{tpu_custom_call.1} parent=1 // pred_region
      %198 = vsyncadd [#allocation5], 0
      %s200 = sshll.u32 [#allocation9], 4
      %s201 = int_to_ptr.vmem [resolvable:$true] %s200
      %s202 = sshll.u32 %s5, 4
      %s203 = int_to_ptr.hbm [resolvable:$true] %s202
      %205 = dma.vmem_to_hbm [thread:$0]  %s201, 128, %s203, [#allocation5]
    $region45: #{tpu_custom_call.1} parent=1 // pred_fallthru
      _
    // Predicated region
    $region46: #{tpu_custom_call.1} parent=1 // pred_check
      _
    $region47: #{tpu_custom_call.1} parent=1 // pred_check_branch
      %207 = sbr.rel (0) target = $region49
    $region48: #{tpu_custom_call.1} parent=1 // pred_region
      %209 = dma.done [#allocation5], 128
    $region49: #{tpu_custom_call.1} parent=1 // pred_fallthru
      _
    %210 = vsyncpa [#allocation4], 1
    %211 = vsyncpa [#allocation7], 1
    %212 = vsyncpa [#allocation5], 1

// kernel: tpu_custom_call.1
$region0: #{tpu_custom_call.1}
  #allocation0 [shape = 'u32[]', space=smem, size = 0x4, offset = 0x4, fixed_abs, tag = 'smem constant byte address 0x4 - core index']
  #allocation1 [shape = 'u32[72,128]{1,0:T(1,128)}', space=vmem, size = 0x9000, scoped, tag = 'internal scratch']
  #allocation2 [shape = 'f32[8,128]{1,0:T(8,128)}', space=vmem, size = 0x1000, scoped, tag = 'scratch operand']
  %s0 = inlined_call_operand.hbm [shape: f32[8,16], index: 0, kind: input, shape index: {}]
  %s1 = inlined_call_operand.hbm [shape: bf16[16,128], index: 1, kind: input, shape index: {}]
  %s2 = inlined_call_operand.vmem [shape: f32[1,128], index: 2, kind: input, shape index: {}]
  %s3 = inlined_call_operand.hbm [shape: bf16[128,128], index: 3, kind: input, shape index: {}]
  %s4 = inlined_call_operand.vmem [shape: f32[1,128], index: 4, kind: input, shape index: {}]
  %s5 = inlined_call_operand.hbm [shape: f32[8,128], index: 5, kind: output, shape index: {}]
  %s6 = sld [smem:[#allocation0]]
  $region50: #{tpu_custom_call.1} parent=0
    _
  %s8 = ssub.s32 1, %s6
  %s9 = scalar_select 0, %s8, %s6
  $region1: #{tpu_custom_call.1} parent=0
    #allocation3 [shape = 'u8[4096]{0}', space=vmem, size = 0x1000, scoped, tag = 'input window, operand 0, single buffered']
    #allocation4 [shape = 's32[1]{0}', space=sflag, size = 0x4, scoped, tag = 'scoped memory for tpu_custom_call.1']
    #allocation5 [shape = 's32[1]{0}', space=sflag, size = 0x4, scoped, tag = 'scoped memory for tpu_custom_call.1']
    #allocation6 [shape = 'u8[4096]{0}', space=vmem, size = 0x1000, scoped, tag = 'input window, operand 1, single buffered']
    #allocation7 [shape = 's32[1]{0}', space=sflag, size = 0x4, scoped, tag = 'scoped memory for tpu_custom_call.1']
    #allocation8 [shape = 'u8[32768]{0}', space=vmem, size = 0x8000, scoped, tag = 'input window, operand 3, single buffered']
    #allocation9 [shape = 'u8[4096]{0}', space=vmem, size = 0x1000, scoped, tag = 'output window, operand 0, single buffered']
    %10 = vsyncpa [#allocation4], 0
    %11 = vsyncpa [#allocation7], 0
    %12 = vsyncpa [#allocation5], 0
    // Predicated region
    $region2: #{tpu_custom_call.1} parent=1 // pred_check
      _
    $region3: #{tpu_custom_call.1} parent=1 // pred_check_branch
      %14 = sbr.rel (0) target = $region5
    $region4: #{tpu_custom_call.1} parent=1 // pred_region
      %16 = vsyncadd [#allocation4], 0
      %s18 = sshll.u32 %s0, 4
      %s19 = int_to_ptr.hbm [resolvable:$true] %s18
      %s20 = sshll.u32 [#allocation3], 4
      %s21 = int_to_ptr.vmem [resolvable:$true] %s20
      %23 = dma.hbm_to_vmem [thread:$0]  %s19, 128, %s21, [#allocation4]
    $region5: #{tpu_custom_call.1} parent=1 // pred_fallthru
      _
    // Predicated region
    $region6: #{tpu_custom_call.1} parent=1 // pred_check
      _
    $region7: #{tpu_custom_call.1} parent=1 // pred_check_branch
      %25 = sbr.rel (0) target = $region9
    $region8: #{tpu_custom_call.1} parent=1 // pred_region
      %27 = vsyncadd [#allocation7], 0
      %s28 = sshll.u32 %s1, 4
      %s29 = int_to_ptr.hbm [resolvable:$true] %s28
      %s30 = sshll.u32 [#allocation6], 4
      %s31 = int_to_ptr.vmem [resolvable:$true] %s30
      %36 = dma.hbm_to_vmem [thread:$0]  %s29, 128, %s31, [#allocation7], 64, 64, 4
    $region9: #{tpu_custom_call.1} parent=1 // pred_fallthru
      _
    // Predicated region
    $region10: #{tpu_custom_call.1} parent=1 // pred_check
      _
    $region11: #{tpu_custom_call.1} parent=1 // pred_check_branch
      %38 = sbr.rel (0) target = $region13
    $region12: #{tpu_custom_call.1} parent=1 // pred_region
      _
    $region13: #{tpu_custom_call.1} parent=1 // pred_fallthru
      _
    // Predicated region
    $region14: #{tpu_custom_call.1} parent=1 // pred_check
      _
    $region15: #{tpu_custom_call.1} parent=1 // pred_check_branch
      %40 = sbr.rel (0) target = $region17
    $region16: #{tpu_custom_call.1} parent=1 // pred_region
      %42 = vsyncadd [#allocation7], 0
      %s43 = sshll.u32 %s3, 4
      %s44 = int_to_ptr.hbm [resolvable:$true] %s43
      %s45 = sshll.u32 [#allocation8], 4
      %s46 = int_to_ptr.vmem [resolvable:$true] %s45
      %51 = dma.hbm_to_vmem [thread:$0]  %s44, 1024, %s46, [#allocation7], 64, 64, 4
    $region17: #{tpu_custom_call.1} parent=1 // pred_fallthru
      _
    // Predicated region
    $region18: #{tpu_custom_call.1} parent=1 // pred_check
      _
    $region19: #{tpu_custom_call.1} parent=1 // pred_check_branch
      %53 = sbr.rel (0) target = $region21
    $region20: #{tpu_custom_call.1} parent=1 // pred_region
      _
    $region21: #{tpu_custom_call.1} parent=1 // pred_fallthru
      _
    // Predicated region
    $region22: #{tpu_custom_call.1} parent=1 // pred_check
      _
    $region23: #{tpu_custom_call.1} parent=1 // pred_check_branch
      %55 = sbr.rel (0) target = $region25
    $region24: #{tpu_custom_call.1} parent=1 // pred_region
      %57 = dma.done [#allocation4], 128
    $region25: #{tpu_custom_call.1} parent=1 // pred_fallthru
      _
    // Predicated region
    $region26: #{tpu_custom_call.1} parent=1 // pred_check
      _
    $region27: #{tpu_custom_call.1} parent=1 // pred_check_branch
      %59 = sbr.rel (0) target = $region29
    $region28: #{tpu_custom_call.1} parent=1 // pred_region
      %61 = dma.done [#allocation7], 128
    $region29: #{tpu_custom_call.1} parent=1 // pred_fallthru
      _
    // Predicated region
    $region30: #{tpu_custom_call.1} parent=1 // pred_check
      _
    $region31: #{tpu_custom_call.1} parent=1 // pred_check_branch
      %63 = sbr.rel (0) target = $region33
    $region32: #{tpu_custom_call.1} parent=1 // pred_region
      %65 = dma.done [#allocation7], 1024
    $region33: #{tpu_custom_call.1} parent=1 // pred_fallthru
      _
    %p67 = scmp.eq.s32.totalorder 0, 0
    // Predicated region
    $region34: #{tpu_custom_call.1} parent=1 // pred_check
      %p68 = pneg %p67
    $region35: #{tpu_custom_call.1} parent=1 // pred_check_branch
      %70 = sbr.rel (%p68) target = $region37
    $region36: #{tpu_custom_call.1} parent=1 // pred_region
      %71 = vst [vmem:[#allocation2] sm:$0xff] 0.0
    $region37: #{tpu_custom_call.1} parent=1 // pred_fallthru
      _
    %v72 = vld [vmem:[#allocation3] sm:$0xff]
    %v73 = vpack.c.bf16 %v72, %v72
    %v74 = vld [vmem:[#allocation6] sm:$0xf]
    %v75 = vld [vmem:[#allocation6 + $0x4] sm:$0xf]
    %v76 = vld [vmem:[%s2] sm:$0x1]
    %v78 = vperm.slane %v76, 0
    %v82 = vunpack.c.l.b16 %v74
    %v83 = vunpack.c.l.b16 %v75
    %v84 = vpack.c.b16 %v83, %v82
    %vm86 = vcmask 130048
    %v88 = vsel %vm86, %v73, 0
    %90 = vmatpush.bf16.msra.mxu0 0
    %91 = vmatpush.bf16.msra.mxu0 0
    %92 = vmatpush.bf16.msra.mxu0 0
    %93 = vmatpush.bf16.msra.mxu0 0
    %94 = vmatpush.bf16.msra.mxu0 0
    %95 = vmatpush.bf16.msra.mxu0 0
    %96 = vmatpush.bf16.msra.mxu0 0
    %97 = vmatpush.bf16.msra.mxu0 %v84
    %98 = vmatmul.bf16.gmra.mxu0 %v88
    %v99 = vpop.f32.mrf.mxu0
    %v100 = vadd.f32 %v78, %v99
    %v101 = vpop.f32.mrf.mxu0
    %102 = vdwg.mxu0
    %v103 = vmax.f32 %v100, 0.0
    %v104 = vld [vmem:[#allocation2] sm:$0xff]
    %v105 = vpack.c.bf16 %v103, %v103
    %v106 = vld [vmem:[#allocation8] sm:$0xf]
    %v107 = vld [vmem:[#allocation8 + $0x4] sm:$0xf]
    %v108 = vld [vmem:[#allocation8 + $0x8] sm:$0xf]
    %v109 = vld [vmem:[#allocation8 + $0xc] sm:$0xf]
    %v110 = vld [vmem:[#allocation8 + $0x10] sm:$0xf]
    %v111 = vld [vmem:[#allocation8 + $0x14] sm:$0xf]
    %v112 = vld [vmem:[#allocation8 + $0x18] sm:$0xf]
    %v113 = vld [vmem:[#allocation8 + $0x1c] sm:$0xf]
    %v114 = vld [vmem:[#allocation8 + $0x20] sm:$0xf]
    %v115 = vld [vmem:[#allocation8 + $0x24] sm:$0xf]
    %v116 = vld [vmem:[#allocation8 + $0x28] sm:$0xf]
    %v117 = vld [vmem:[#allocation8 + $0x2c] sm:$0xf]
    %v118 = vld [vmem:[#allocation8 + $0x30] sm:$0xf]
    %v119 = vld [vmem:[#allocation8 + $0x34] sm:$0xf]
    %v120 = vld [vmem:[#allocation8 + $0x38] sm:$0xf]
    %v121 = vld [vmem:[#allocation8 + $0x3c] sm:$0xf]
    %v138 = vunpack.c.l.b16 %v106
    %v139 = vunpack.c.l.b16 %v107
    %v140 = vunpack.c.l.b16 %v108
    %v141 = vunpack.c.l.b16 %v109
    %v142 = vunpack.c.l.b16 %v110
    %v143 = vunpack.c.l.b16 %v111
    %v144 = vunpack.c.l.b16 %v112
    %v145 = vunpack.c.l.b16 %v113
    %v146 = vunpack.c.l.b16 %v114
    %v147 = vunpack.c.l.b16 %v115
    %v148 = vunpack.c.l.b16 %v116
    %v149 = vunpack.c.l.b16 %v117
    %v150 = vunpack.c.l.b16 %v118
    %v151 = vunpack.c.l.b16 %v119
    %v152 = vunpack.c.l.b16 %v120
    %v153 = vunpack.c.l.b16 %v121
    %v154 = vpack.c.b16 %v139, %v138
    %v155 = vpack.c.b16 %v141, %v140
    %v156 = vpack.c.b16 %v143, %v142
    %v157 = vpack.c.b16 %v145, %v144
    %v158 = vpack.c.b16 %v147, %v146
    %v159 = vpack.c.b16 %v149, %v148
    %v160 = vpack.c.b16 %v151, %v150
    %v161 = vpack.c.b16 %v153, %v152
    %170 = vmatpush.bf16.msra.mxu0 %v161
    %171 = vmatpush.bf16.msra.mxu0 %v160
    %172 = vmatpush.bf16.msra.mxu0 %v159
    %173 = vmatpush.bf16.msra.mxu0 %v158
    %174 = vmatpush.bf16.msra.mxu0 %v157
    %175 = vmatpush.bf16.msra.mxu0 %v156
    %176 = vmatpush.bf16.msra.mxu0 %v155
    %177 = vmatpush.bf16.msra.mxu0 %v154
    %178 = vmatmul.bf16.gmra.mxu0 %v105
    %v179 = vpop.f32.mrf.mxu0
    %v180 = vadd.f32 0.0, %v179
    %v181 = vpop.f32.mrf.mxu0
    %182 = vdwg.mxu0
    %v183 = vadd.f32 %v104, %v180
    %184 = vst [vmem:[#allocation2] sm:$0xff] %v183
    // Predicated region
    $region38: #{tpu_custom_call.1} parent=1 // pred_check
      %p185 = pneg %p67
    $region39: #{tpu_custom_call.1} parent=1 // pred_check_branch
      %187 = sbr.rel (%p185) target = $region41
    $region40: #{tpu_custom_call.1} parent=1 // pred_region
      %v188 = vld [vmem:[#allocation2] sm:$0xff]
      %v189 = vld [vmem:[%s4] sm:$0x1]
      %v191 = vperm.slane %v189, 0
      %v193 = vadd.f32 %v188, %v191
      %194 = vst [vmem:[#allocation9] sm:$0xff] %v193
    $region41: #{tpu_custom_call.1} parent=1 // pred_fallthru
      _
    // Predicated region
    $region42: #{tpu_custom_call.1} parent=1 // pred_check
      _
    $region43: #{tpu_custom_call.1} parent=1 // pred_check_branch
      %196 = sbr.rel (0) target = $region45
    $region44: #{tpu_custom_call.1} parent=1 // pred_region
      %198 = vsyncadd [#allocation5], 0
      %s200 = sshll.u32 [#allocation9], 4
      %s201 = int_to_ptr.vmem [resolvable:$true] %s200
      %s202 = sshll.u32 %s5, 4
      %s203 = int_to_ptr.hbm [resolvable:$true] %s202
      %205 = dma.vmem_to_hbm [thread:$0]  %s201, 128, %s203, [#allocation5]
    $region45: #{tpu_custom_call.1} parent=1 // pred_fallthru
      _
    // Predicated region
    $region46: #{tpu_custom_call.1} parent=1 // pred_check
      _
    $region47: #{tpu_custom_call.1} parent=1 // pred_check_branch
      %207 = sbr.rel (0) target = $region49
    $region48: #{tpu_custom_call.1} parent=1 // pred_region
      %209 = dma.done [#allocation5], 128
    $region49: #{tpu_custom_call.1} parent=1 // pred_fallthru
      _
    %210 = vsyncpa [#allocation4], 1
    %211 = vsyncpa [#allocation7], 1
    %212 = vsyncpa [#allocation5], 1

</llo_original>
